<compile_context>
chip_gen: v7x
topology: tpu7x:2x2x1
jax: 0.10.0
libtpu: 0.0.40
codegen_flags: <defaults>
</compile_context>

<pallas_src>
import jax
import jax.numpy as jnp
from jax import lax
from jax.experimental import pallas as pl
from jax.experimental.pallas import tpu as pltpu

KS = 7  # Conv2d kernel size of the ChannelAttention module


def _round_up(x, m):
    return ((x + m - 1) // m) * m


def _im2col(x, ks):
    """(N, C, H, W) -> (N*Ho*Wo, C*ks*ks) patch matrix for a VALID, stride-1 conv.

    For the canonical CBAM attention input (H == W == ks) this is a pure reshape.
    """
    N, C, H, W = x.shape
    Ho, Wo = H - ks + 1, W - ks + 1
    if Ho == 1 and Wo == 1:
        return x.reshape(N, C * ks * ks), Ho, Wo
    # Wrapper-side layout plumbing only (no compute): 49 shifted slices.
    cols = jnp.stack(
        [jnp.stack([x[:, :, kh:kh + Ho, kw:kw + Wo] for kw in range(ks)], axis=2)
         for kh in range(ks)],
        axis=2)                                            # (N, C, kh, kw, Ho, Wo)
    cols = cols.transpose(0, 4, 5, 1, 2, 3).reshape(N * Ho * Wo, C * ks * ks)
    return cols, Ho, Wo


def _conv_mm_kernel(a_ref, w_ref, b_ref, o_ref, acc_ref):
    """One (tm, C_out) output tile; K = C_in*49 is reduced over grid axis 1."""
    @pl.when(pl.program_id(1) == 0)
    def _():
        acc_ref[...] = jnp.zeros_like(acc_ref)

    acc_ref[...] += jnp.dot(a_ref[...], w_ref[...],
                            preferred_element_type=jnp.float32)

    @pl.when(pl.program_id(1) == pl.num_programs(1) - 1)
    def _():
        o_ref[...] = (acc_ref[...] + b_ref[...]).astype(o_ref.dtype)


def channel_attention(x, weight, bias, *, mxu_dtype=jnp.bfloat16):
    """ChannelAttention.forward: Conv2d(C_in, C_out, 7, padding=0)(x), NCHW, f32 out."""
    N, C_in, H, W = x.shape
    C_out = weight.shape[0]
    assert weight.shape == (C_out, C_in, KS, KS)
    assert H >= KS and W >= KS

    # conv == matmul: patches (M, K) @ weight^T (K, C_out) + bias
    patches, Ho, Wo = _im2col(x, KS)                 # (M, K), K = C_in*49
    M, K = patches.shape
    w_mat = weight.reshape(C_out, K).T               # (K, C_out); (ci, kh, kw) order
    b_row = bias.reshape(1, C_out).astype(jnp.float32)

    # ---- tiling: 8/128-aligned blocks, K padded to a tile multiple -------------
    tm = min(256, _round_up(M, 8))                   # row tile ("parallel")
    tk = min(1024, _round_up(K, 128))                # K tile ("arbitrary", last)
    m_pad = _round_up(M, tm)
    k_pad = _round_up(K, tk)

    a = jnp.pad(patches.astype(mxu_dtype), ((0, m_pad - M), (0, k_pad - K)))
    w = jnp.pad(w_mat.astype(mxu_dtype), ((0, k_pad - K), (0, 0)))

    grid = (m_pad // tm, k_pad // tk)
    out = pl.pallas_call(
        _conv_mm_kernel,
        out_shape=jax.ShapeDtypeStruct((m_pad, C_out), jnp.float32),
        grid_spec=pltpu.PrefetchScalarGridSpec(
            num_scalar_prefetch=0,
            grid=grid,
            in_specs=[
                pl.BlockSpec((tm, tk), lambda i, k: (i, k)),      # patch tile (bf16)
                pl.BlockSpec((tk, C_out), lambda i, k: (k, 0)),   # weight tile (bf16)
                pl.BlockSpec((1, C_out), lambda i, k: (0, 0)),    # bias row (f32)
            ],
            out_specs=pl.BlockSpec((tm, C_out), lambda i, k: (i, 0)),
            scratch_shapes=[pltpu.VMEM((tm, C_out), jnp.float32)],
        ),
        compiler_params=pltpu.CompilerParams(
            dimension_semantics=("parallel", "arbitrary")),
    )(a, w, b_row)

    # (M, C_out) -> NCHW
    return out[:M].reshape(N, Ho, Wo, C_out).transpose(0, 3, 1, 2)


# ------------------------------ pure-JAX reference ------------------------------
def channel_attention_ref(x, weight, bias, operand_dtype=jnp.float32):
    dn = ("NCHW", "OIHW", "NCHW")
    y = lax.conv_general_dilated(
        x.astype(operand_dtype), weight.astype(operand_dtype), (1, 1), "VALID",
        dimension_numbers=dn, preferred_element_type=jnp.float32)
    return y + bias.reshape(1, -1, 1, 1).astype(jnp.float32)


if __name__ == "__main__":
    key = jax.random.PRNGKey(0)
    k0, k1, k2, k3, k4, k5 = jax.random.split(key, 6)

    # Case A: canonical CBAM usage -- 7x7 pooled map -> (N, C, 1, 1) channel weights.
    N, C = 2, 128
    x_a = jax.random.normal(k0, (N, C, KS, KS), jnp.float32)
    w_a = jax.random.normal(k1, (C, C, KS, KS), jnp.float32) * 0.02
    b_a = jax.random.normal(k2, (C,), jnp.float32) * 0.1

    out_a = jax.block_until_ready(channel_attention(x_a, w_a, b_a))
    ref_a = channel_attention_ref(x_a, w_a, b_a, operand_dtype=jnp.bfloat16)
    assert out_a.shape == (N, C, 1, 1)
    assert jnp.allclose(out_a, ref_a, atol=2e-3, rtol=2e-3), float(
        jnp.max(jnp.abs(out_a - ref_a)))

    # Case B: generic spatial input (the module forward works for any H, W >= 7).
    N2, C2 = 2, 16
    x_b = jax.random.normal(k3, (N2, C2, 16, 16), jnp.float32)
    w_b = jax.random.normal(k4, (C2, C2, KS, KS), jnp.float32) * 0.05
    b_b = jax.random.normal(k5, (C2,), jnp.float32) * 0.1

    out_b = jax.block_until_ready(channel_attention(x_b, w_b, b_b))
    ref_b = channel_attention_ref(x_b, w_b, b_b, operand_dtype=jnp.bfloat16)
    assert out_b.shape == (N2, C2, 10, 10)
    assert jnp.allclose(out_b, ref_b, atol=2e-3, rtol=2e-3), float(
        jnp.max(jnp.abs(out_b - ref_b)))

    print("KERNEL_OK")
</pallas_src>

<mosaic_0001>
module attributes {stable_mosaic.version = 11 : i64} {
  func.func @_conv_mm_kernel(%arg0: i32, %arg1: i32, %arg2: memref<8x1024xbf16, #tpu.memory_space<vmem>>, %arg3: memref<1024x128xbf16, #tpu.memory_space<vmem>>, %arg4: memref<1x128xf32, #tpu.memory_space<vmem>>, %arg5: memref<8x128xf32, #tpu.memory_space<vmem>>, %arg6: memref<8x128xf32, #tpu.memory_space<vmem>>) attributes {dimension_semantics = [#tpu.dimension_semantics<parallel>, #tpu.dimension_semantics<arbitrary>], iteration_bounds = array<i64: 1, 7>, scalar_prefetch = 0 : i64, scratch_operands = 1 : i64, tpu.core_type = #tpu.core_type<tc>, window_params = [{transform_indices = @transform_0, window_bounds = array<i64: 8, 1024>}, {transform_indices = @transform_1, window_bounds = array<i64: 1024, 128>}, {pipeline_mode = #tpu.pipeline_mode<synchronous>, transform_indices = @transform_2, window_bounds = array<i64: 1, 128>}, {transform_indices = @transform_3, window_bounds = array<i64: 8, 128>}]} {
    %c0_i32 = arith.constant 0 : i32
    %0 = arith.cmpi eq, %arg1, %c0_i32 : i32
    %1 = arith.extui %0 : i1 to i32
    %c0_i32_0 = arith.constant 0 : i32
    %2 = arith.cmpi ne, %1, %c0_i32_0 : i32
    scf.if %2 {
      %cst_9 = arith.constant 0.000000e+00 : f32
      %12 = vector.broadcast %cst_9 : f32 to vector<8x128xf32>
      %c0_10 = arith.constant 0 : index
      %c0_11 = arith.constant 0 : index
      %13 = vector.load %arg6[%c0_10, %c0_11] : memref<8x128xf32, #tpu.memory_space<vmem>>, vector<8x128xf32>
      tpu.vector_store %arg6[%c0_10, %c0_11], %12 {strides = array<i32>} : memref<8x128xf32, #tpu.memory_space<vmem>>, vector<8x128xf32>,
    } else {
    }
    %c0 = arith.constant 0 : index
    %c0_1 = arith.constant 0 : index
    %3 = vector.load %arg6[%c0, %c0_1] : memref<8x128xf32, #tpu.memory_space<vmem>>, vector<8x128xf32>
    %c0_2 = arith.constant 0 : index
    %c0_3 = arith.constant 0 : index
    %4 = vector.load %arg2[%c0_2, %c0_3] : memref<8x1024xbf16, #tpu.memory_space<vmem>>, vector<8x1024xbf16>
    %c0_4 = arith.constant 0 : index
    %c0_5 = arith.constant 0 : index
    %5 = vector.load %arg3[%c0_4, %c0_5] : memref<1024x128xbf16, #tpu.memory_space<vmem>>, vector<1024x128xbf16>
    %cst = arith.constant dense<0.000000e+00> : vector<8x128xf32>
    %6 = tpu.matmul %4, %5, %cst {dimension_numbers = #tpu.dot_dimension_numbers<[1], [0], [0], [1], [0, 0, 1, 1], [], []>} : vector<8x1024xbf16>, vector<1024x128xbf16>, vector<8x128xf32> -> vector<8x128xf32>
    %7 = arith.addf %3, %6 : vector<8x128xf32>
    %c0_6 = arith.constant 0 : index
    %c0_7 = arith.constant 0 : index
    %8 = vector.load %arg6[%c0_6, %c0_7] : memref<8x128xf32, #tpu.memory_space<vmem>>, vector<8x128xf32>
    tpu.vector_store %arg6[%c0_6, %c0_7], %7 {strides = array<i32>} : memref<8x128xf32, #tpu.memory_space<vmem>>, vector<8x128xf32>,
    %c6_i32 = arith.constant 6 : i32
    %9 = arith.cmpi eq, %arg1, %c6_i32 : i32
    %10 = arith.extui %9 : i1 to i32
    %c0_i32_8 = arith.constant 0 : i32
    %11 = arith.cmpi ne, %10, %c0_i32_8 : i32
    scf.if %11 {
      %c0_9 = arith.constant 0 : index
      %c0_10 = arith.constant 0 : index
      %12 = vector.load %arg6[%c0_9, %c0_10] : memref<8x128xf32, #tpu.memory_space<vmem>>, vector<8x128xf32>
      %c0_11 = arith.constant 0 : index
      %c0_12 = arith.constant 0 : index
      %13 = vector.load %arg4[%c0_11, %c0_12] : memref<1x128xf32, #tpu.memory_space<vmem>>, vector<1x128xf32>
      %14 = vector.broadcast %13 : vector<1x128xf32> to vector<8x128xf32>
      %15 = arith.addf %12, %14 : vector<8x128xf32>
      %c0_13 = arith.constant 0 : index
      %c0_14 = arith.constant 0 : index
      %16 = vector.load %arg5[%c0_13, %c0_14] : memref<8x128xf32, #tpu.memory_space<vmem>>, vector<8x128xf32>
      tpu.vector_store %arg5[%c0_13, %c0_14], %15 {strides = array<i32>} : memref<8x128xf32, #tpu.memory_space<vmem>>, vector<8x128xf32>,
    } else {
    }
    return
  }
  func.func @transform_0(%arg0: i32, %arg1: i32) -> (i32, i32) {
    %c0_i32 = arith.constant 0 : i32
    return %arg0, %arg1 : i32, i32
  }
  func.func @transform_1(%arg0: i32, %arg1: i32) -> (i32, i32) {
    %c0_i32 = arith.constant 0 : i32
    %c0_i32_0 = arith.constant 0 : i32
    return %arg1, %c0_i32 : i32, i32
  }
  func.func @transform_2(%arg0: i32, %arg1: i32) -> (i32, i32) {
    %c0_i32 = arith.constant 0 : i32
    %c0_i32_0 = arith.constant 0 : i32
    %c0_i32_1 = arith.constant 0 : i32
    return %c0_i32, %c0_i32_0 : i32, i32
  }
  func.func @transform_3(%arg0: i32, %arg1: i32) -> (i32, i32) {
    %c0_i32 = arith.constant 0 : i32
    %c0_i32_0 = arith.constant 0 : i32
    return %arg0, %c0_i32 : i32, i32
  }
}

</mosaic_0001>

<llo_original>
// kernel: tpu_custom_call.1
$region0: #{tpu_custom_call.1}
  #allocation0 [shape = 'u32[]', space=smem, size = 0x4, offset = 0x4, fixed_abs, tag = 'smem constant byte address 0x4 - core index']
  #allocation1 [shape = 'u32[144,128]{1,0:T(1,128)}', space=vmem, size = 0x12000, scoped, tag = 'internal scratch']
  #allocation2 [shape = 'f32[8,128]{1,0:T(8,128)}', space=vmem, size = 0x1000, scoped, tag = 'scratch operand']
  %s0 = inlined_call_operand.hbm [shape: bf16[8,7168], index: 0, kind: input, shape index: {}]
  %s1 = inlined_call_operand.hbm [shape: bf16[7168,128], index: 1, kind: input, shape index: {}]
  %s2 = inlined_call_operand.hbm [shape: f32[1,128], index: 2, kind: input, shape index: {}]
  %s3 = inlined_call_operand.hbm [shape: f32[8,128], index: 3, kind: output, shape index: {}]
  %s4 = sld [smem:[#allocation0]]
  $region65: #{tpu_custom_call.1} parent=0
    _
  %s6 = ssub.s32 1, %s4
  %s7 = scalar_select 0, %s6, %s4
  $region1: #{tpu_custom_call.1} parent=0
    #allocation3 [shape = 'u8[32768]{0}', space=vmem, size = 0x8000, scoped, tag = 'input window, operand 0']
    #allocation4 [shape = 's32[2]{0}', space=sflag, size = 0x8, scoped, tag = 'scoped memory for tpu_custom_call.1']
    #allocation5 [shape = 's32[2]{0}', space=sflag, size = 0x8, scoped, tag = 'scoped memory for tpu_custom_call.1']
    #allocation6 [shape = 'u8[524288]{0}', space=vmem, size = 0x80000, scoped, tag = 'input window, operand 1']
    #allocation7 [shape = 's32[2]{0}', space=sflag, size = 0x8, scoped, tag = 'scoped memory for tpu_custom_call.1']
    #allocation8 [shape = 'u8[512]{0}', space=vmem, size = 0x400, scoped, tag = 'input window, operand 2, single buffered']
    #allocation9 [shape = 'u8[4096]{0}', space=vmem, size = 0x1000, scoped, tag = 'output window, operand 0, single buffered']
    %8 = vsyncpa [#allocation4], 0
    %s9 = scalar_lea.sflag [#allocation4], 1
    %10 = vsyncpa %s9, 0
    %11 = vsyncpa [#allocation7], 0
    %s12 = scalar_lea.sflag [#allocation7], 1
    %13 = vsyncpa %s12, 0
    %14 = vsyncpa [#allocation5], 0
    loop: start=0, step=1, limit=9
    $region2: #{tpu_custom_call.1} parent=1 // loop_pre_header
      _
    $region3: #{tpu_custom_call.1} parent=1 // loop_header
      %s16 = sphi 0, %s20
      %p17 = scmp.ge.s32.totalorder %s16, 9
      %s23 = sphi 0, %s35
      %s24 = sphi 0, %s31
      %s25 = sphi 0, %s23
      %s26 = sphi 0, %s24
      %s27 = sphi 0, %s25
      %s28 = sphi 0, %s26
      %s40 = sphi 0, %s42
      %s43 = sphi 0, %s40
      %s44 = sphi 0, %s43
      %s60 = sphi 0, %s44
      %s66 = sphi 0, %s68
      %s69 = sphi 0, %s66
      %s70 = sphi 0, %s69
      %s86 = sphi 0, %s70
      %s90 = sphi 0, %s90
      %s92 = sphi 0, %s90
      %s93 = sphi 0, %s92
      %s107 = sphi 0, %s93
      %s113 = sphi 0, %s115
      %s116 = sphi 0, %s113
      %s117 = sphi 0, %s116
      %s133 = sphi 0, %s117
    $region4: #{tpu_custom_call.1} parent=1 // loop_header_branch
      %19 = sbr.rel (%p17) target = $region8
    $region5: #{tpu_custom_call.1} parent=1 // loop_body
      %s21 = ssub.s32 %s16, 1
      %s22 = ssub.s32 %s16, 2
      %s29 = sadd.s32 1, %s24
      %p30 = scmp.ge.s32.totalorder %s29, 7
      %s31 = scalar_select %p30, 0, %s29
      %s32 = sadd.s32 1, %s23
      %s33 = scalar_select %p30, %s32, %s23
      %p34 = scmp.ge.s32.totalorder %s33, 1
      %s35 = scalar_select %p34, 0, %s33
      %s36 = ssub.s32 %s23, %s35
      %s37 = ssub.s32 %s24, %s31
      %s38 = sor.u32 %s36, %s37
      %p39 = scmp.eq.s32.totalorder %s38, 0
      %s41 = sadd.s32 %s40, 1
      %s42 = scalar_select %p39, %s40, %s41
      %p45 = pneg %p39
      %p46 = scmp.eq.s32.totalorder %s16, 6
      %p47 = por %p45, %p46
      %p48 = scmp.ne.s32.totalorder %s40, %s43
      %p49 = scmp.eq.s32.totalorder %s16, 0
      %p50 = por %p48, %p49
      %p51 = scmp.ne.s32.totalorder %s40, %s43
      %p52 = scmp.eq.s32.totalorder %s21, 6
      %p53 = por %p51, %p52
      %p54 = scmp.ne.s32.totalorder %s43, %s44
      %p55 = scmp.eq.s32.totalorder %s21, 0
      %p56 = por %p54, %p55
      %p57 = scmp.ne.s32.totalorder %s43, %s44
      %p58 = scmp.eq.s32.totalorder %s22, 6
      %p59 = por %p57, %p58
      %p61 = scmp.ne.s32.totalorder %s44, %s60
      %p62 = scmp.eq.s32.totalorder %s22, 0
      %p63 = por %p61, %p62
      %s64 = ssub.s32 %s24, %s31
      %p65 = scmp.eq.s32.totalorder %s64, 0
      %s67 = sadd.s32 %s66, 1
      %s68 = scalar_select %p65, %s66, %s67
      %p71 = pneg %p65
      %p72 = scmp.eq.s32.totalorder %s16, 6
      %p73 = por %p71, %p72
      %p74 = scmp.ne.s32.totalorder %s66, %s69
      %p75 = scmp.eq.s32.totalorder %s16, 0
      %p76 = por %p74, %p75
      %p77 = scmp.ne.s32.totalorder %s66, %s69
      %p78 = scmp.eq.s32.totalorder %s21, 6
      %p79 = por %p77, %p78
      %p80 = scmp.ne.s32.totalorder %s69, %s70
      %p81 = scmp.eq.s32.totalorder %s21, 0
      %p82 = por %p80, %p81
      %p83 = scmp.ne.s32.totalorder %s69, %s70
      %p84 = scmp.eq.s32.totalorder %s22, 6
      %p85 = por %p83, %p84
      %p87 = scmp.ne.s32.totalorder %s70, %s86
      %p88 = scmp.eq.s32.totalorder %s22, 0
      %p89 = por %p87, %p88
      %s91 = sadd.s32 %s90, 1
      %p94 = scmp.eq.s32.totalorder %s16, 6
      %p95 = scmp.ne.s32.totalorder %s90, %s92
      %p96 = scmp.eq.s32.totalorder %s16, 0
      %p97 = por %p95, %p96
      %p98 = scmp.ne.s32.totalorder %s90, %s92
      %p99 = scmp.eq.s32.totalorder %s21, 6
      %p100 = por %p98, %p99
      %p101 = scmp.ne.s32.totalorder %s92, %s93
      %p102 = scmp.eq.s32.totalorder %s21, 0
      %p103 = por %p101, %p102
      %p104 = scmp.ne.s32.totalorder %s92, %s93
      %p105 = scmp.eq.s32.totalorder %s22, 6
      %p106 = por %p104, %p105
      %p108 = scmp.ne.s32.totalorder %s93, %s107
      %p109 = scmp.eq.s32.totalorder %s22, 0
      %p110 = por %p108, %p109
      %s111 = ssub.s32 %s23, %s35
      %p112 = scmp.eq.s32.totalorder %s111, 0
      %s114 = sadd.s32 %s113, 1
      %s115 = scalar_select %p112, %s113, %s114
      %p118 = pneg %p112
      %p119 = scmp.eq.s32.totalorder %s16, 6
      %p120 = por %p118, %p119
      %p121 = scmp.ne.s32.totalorder %s113, %s116
      %p122 = scmp.eq.s32.totalorder %s16, 0
      %p123 = por %p121, %p122
      %p124 = scmp.ne.s32.totalorder %s113, %s116
      %p125 = scmp.eq.s32.totalorder %s21, 6
      %p126 = por %p124, %p125
      %p127 = scmp.ne.s32.totalorder %s116, %s117
      %p128 = scmp.eq.s32.totalorder %s21, 0
      %p129 = por %p127, %p128
      %p130 = scmp.ne.s32.totalorder %s116, %s117
      %p131 = scmp.eq.s32.totalorder %s22, 6
      %p132 = por %p130, %p131
      %p134 = scmp.ne.s32.totalorder %s117, %s133
      %p135 = scmp.eq.s32.totalorder %s22, 0
      %p136 = por %p134, %p135
      %p137 = scmp.le.s32.totalorder 1, %s16
      %p138 = scmp.lt.s32.totalorder %s16, 8
      %p139 = pnand %p137, %p138
      %p140 = pneg %p139
      // Predicated region
      $region9: #{tpu_custom_call.1} parent=5 // pred_check
        _
      $region10: #{tpu_custom_call.1} parent=5 // pred_check_branch
        %142 = sbr.rel (%p139) target = $region12
      $region11: #{tpu_custom_call.1} parent=5 // pred_region
        %s143 = ssub.s32 %s16, 1
        // Predicated region
        $region13: #{tpu_custom_call.1} parent=11 // pred_check
          %p144 = pneg %p103
        $region14: #{tpu_custom_call.1} parent=11 // pred_check_branch
          %146 = sbr.rel (%p144) target = $region16
        $region15: #{tpu_custom_call.1} parent=11 // pred_region
          %s148 = ssub.s32 16, 16
          %149 = vsyncadd [#allocation7], %s148
          %s151 = sshll.u32 [#allocation8], 4
          %s152 = int_to_ptr.vmem [resolvable:$true] %s151
          %154 = dma.hbm_to_vmem [thread:$0]  %s2, 16, %s152, [#allocation7]
        $region16: #{tpu_custom_call.1} parent=11 // pred_fallthru
          _
      $region12: #{tpu_custom_call.1} parent=5 // pred_fallthru
        _
      %p155 = scmp.lt.s32.totalorder %s16, 7
      // Predicated region
      $region17: #{tpu_custom_call.1} parent=5 // pred_check
        %p156 = pneg %p155
      $region18: #{tpu_custom_call.1} parent=5 // pred_check_branch
        %158 = sbr.rel (%p156) target = $region20
      $region19: #{tpu_custom_call.1} parent=5 // pred_region
        // Predicated region
        $region21: #{tpu_custom_call.1} parent=19 // pred_check
          %p159 = pneg %p50
        $region22: #{tpu_custom_call.1} parent=19 // pred_check_branch
          %161 = sbr.rel (%p159) target = $region24
        $region23: #{tpu_custom_call.1} parent=19 // pred_region
          %s162 = sand.u32 %s40, 1
          %s163 = scalar_lea.sflag [#allocation4], %s162
          %s164 = sand.u32 %s40, 1
          %s165 = smul.addr %s164, 32
          %s166 = scalar_lea.vmem [#allocation3], %s165
          %s167 = smul.u32 8, %s24
          %s169 = ssub.s32 512, 512
          %170 = vsyncadd %s163, %s169
          %s171 = smul.addr %s23, 56
          %s172 = sadd.s32 %s167, %s171
          %s173 = smul.addr %s172, 64
          %s174 = scalar_lea.hbm %s0, %s173
          %s176 = sshll.u32 %s166, 4
          %s177 = int_to_ptr.vmem [resolvable:$true] %s176
          %179 = dma.hbm_to_vmem [thread:$0]  %s174, 512, %s177, %s163
        $region24: #{tpu_custom_call.1} parent=19 // pred_fallthru
          _
        // Predicated region
        $region25: #{tpu_custom_call.1} parent=19 // pred_check
          %p180 = pneg %p76
        $region26: #{tpu_custom_call.1} parent=19 // pred_check_branch
          %182 = sbr.rel (%p180) target = $region28
        $region27: #{tpu_custom_call.1} parent=19 // pred_region
          %s183 = sand.u32 %s16, 1
          %s184 = scalar_lea.sflag [#allocation7], %s183
          %s185 = sand.u32 %s66, 1
          %s186 = smul.addr %s185, 512
          %s187 = scalar_lea.vmem [#allocation6], %s186
          %s188 = smul.u32 128, %s24
          %s190 = ssub.s32 8192, 8192
          %191 = vsyncadd %s184, %s190
          %s192 = smul.addr %s188, 64
          %s193 = scalar_lea.hbm %s1, %s192
          %s194 = sshll.u32 %s187, 4
          %s195 = int_to_ptr.vmem [resolvable:$true] %s194
          %200 = dma.hbm_to_vmem [thread:$0]  %s193, 8192, %s195, %s184, 64, 64, 4
        $region28: #{tpu_custom_call.1} parent=19 // pred_fallthru
          _
      $region20: #{tpu_custom_call.1} parent=5 // pred_fallthru
        _
      %p201 = scmp.le.s32.totalorder 1, %s16
      %p202 = scmp.lt.s32.totalorder %s16, 8
      %p203 = pnand %p201, %p202
      %p204 = pneg %p203
      // Predicated region
      $region29: #{tpu_custom_call.1} parent=5 // pred_check
        _
      $region30: #{tpu_custom_call.1} parent=5 // pred_check_branch
        %206 = sbr.rel (%p203) target = $region32
      $region31: #{tpu_custom_call.1} parent=5 // pred_region
        %s207 = ssub.s32 %s16, 1
        %s208 = sand.u32 %s43, 1
        %s209 = scalar_lea.sflag [#allocation4], %s208
        %s210 = sand.u32 %s43, 1
        %s211 = smul.addr %s210, 32
        %s212 = scalar_lea.vmem [#allocation3], %s211
        // Predicated region
        $region33: #{tpu_custom_call.1} parent=31 // pred_check
          %p213 = pneg %p56
        $region34: #{tpu_custom_call.1} parent=31 // pred_check_branch
          %215 = sbr.rel (%p213) target = $region36
        $region35: #{tpu_custom_call.1} parent=31 // pred_region
          %216 = dma.done %s209, 512
        $region36: #{tpu_custom_call.1} parent=31 // pred_fallthru
          _
        %s217 = sand.u32 %s21, 1
        %s218 = scalar_lea.sflag [#allocation7], %s217
        %s219 = sand.u32 %s69, 1
        %s220 = smul.addr %s219, 512
        %s221 = scalar_lea.vmem [#allocation6], %s220
        // Predicated region
        $region37: #{tpu_custom_call.1} parent=31 // pred_check
          %p222 = pneg %p82
        $region38: #{tpu_custom_call.1} parent=31 // pred_check_branch
          %224 = sbr.rel (%p222) target = $region40
        $region39: #{tpu_custom_call.1} parent=31 // pred_region
          %225 = dma.done %s218, 8192
        $region40: #{tpu_custom_call.1} parent=31 // pred_fallthru
          _
        // Predicated region
        $region41: #{tpu_custom_call.1} parent=31 // pred_check
          %p226 = pneg %p103
        $region42: #{tpu_custom_call.1} parent=31 // pred_check_branch
          %228 = sbr.rel (%p226) target = $region44
        $region43: #{tpu_custom_call.1} parent=31 // pred_region
          %229 = dma.done [#allocation7], 16
        $region44: #{tpu_custom_call.1} parent=31 // pred_fallthru
          _
        %s230 = sand.u32 %s43, 1
        %s231 = scalar_lea.sflag [#allocation4], %s230
        %s232 = sand.u32 %s43, 1
        %s233 = smul.addr %s232, 32
        %s234 = scalar_lea.vmem [#allocation3], %s233
        %p235 = pneg %p56
        %p236 = pneg %p53
        %s237 = sand.u32 %s21, 1
        %s238 = scalar_lea.sflag [#allocation7], %s237
        %s239 = sand.u32 %s69, 1
        %s240 = smul.addr %s239, 512
        %s241 = scalar_lea.vmem [#allocation6], %s240
        %p242 = pneg %p82
        %p243 = pneg %p79
        %p244 = pneg %p103
        %p245 = pneg %p100
        %p246 = pneg %p129
        %p247 = pneg %p126
        %s248 = smul.u32 8, %s26
        %s249 = smul.u32 128, %s26
        %p251 = scmp.eq.s32.totalorder %s26, 0
        // Predicated region
        $region45: #{tpu_custom_call.1} parent=31 // pred_check
          %p252 = pneg %p251
        $region46: #{tpu_custom_call.1} parent=31 // pred_check_branch
          %254 = sbr.rel (%p252) target = $region48
        $region47: #{tpu_custom_call.1} parent=31 // pred_region
          %255 = vst [vmem:[#allocation2] sm:$0xff] 0.0
        $region48: #{tpu_custom_call.1} parent=31 // pred_fallthru
          _
        %v256 = vld [vmem:[#allocation2] sm:$0xff]
        %v257 = vld [vmem:[%s212] sm:$0xff]
        %v258 = vld [vmem:[%s212 + $0x8] sm:$0xff]
        %v259 = vld [vmem:[%s212 + $0x10] sm:$0xff]
        %v260 = vld [vmem:[%s212 + $0x18] sm:$0xff]
        %v261 = vld [vmem:[%s221] sm:$0xf]
        %v262 = vld [vmem:[%s221 + $0x4] sm:$0xf]
        %v263 = vld [vmem:[%s221 + $0x8] sm:$0xf]
        %v264 = vld [vmem:[%s221 + $0xc] sm:$0xf]
        %v265 = vld [vmem:[%s221 + $0x10] sm:$0xf]
        %v266 = vld [vmem:[%s221 + $0x14] sm:$0xf]
        %v267 = vld [vmem:[%s221 + $0x18] sm:$0xf]
        %v268 = vld [vmem:[%s221 + $0x1c] sm:$0xf]
        %v269 = vld [vmem:[%s221 + $0x20] sm:$0xf]
        %v270 = vld [vmem:[%s221 + $0x24] sm:$0xf]
        %v271 = vld [vmem:[%s221 + $0x28] sm:$0xf]
        %v272 = vld [vmem:[%s221 + $0x2c] sm:$0xf]
        %v273 = vld [vmem:[%s221 + $0x30] sm:$0xf]
        %v274 = vld [vmem:[%s221 + $0x34] sm:$0xf]
        %v275 = vld [vmem:[%s221 + $0x38] sm:$0xf]
        %v276 = vld [vmem:[%s221 + $0x3c] sm:$0xf]
        %v277 = vld [vmem:[%s221 + $0x40] sm:$0xf]
        %v278 = vld [vmem:[%s221 + $0x44] sm:$0xf]
        %v279 = vld [vmem:[%s221 + $0x48] sm:$0xf]
        %v280 = vld [vmem:[%s221 + $0x4c] sm:$0xf]
        %v281 = vld [vmem:[%s221 + $0x50] sm:$0xf]
        %v282 = vld [vmem:[%s221 + $0x54] sm:$0xf]
        %v283 = vld [vmem:[%s221 + $0x58] sm:$0xf]
        %v284 = vld [vmem:[%s221 + $0x5c] sm:$0xf]
        %v285 = vld [vmem:[%s221 + $0x60] sm:$0xf]
        %v286 = vld [vmem:[%s221 + $0x64] sm:$0xf]
        %v287 = vld [vmem:[%s221 + $0x68] sm:$0xf]
        %v288 = vld [vmem:[%s221 + $0x6c] sm:$0xf]
        %v289 = vld [vmem:[%s221 + $0x70] sm:$0xf]
        %v290 = vld [vmem:[%s221 + $0x74] sm:$0xf]
        %v291 = vld [vmem:[%s221 + $0x78] sm:$0xf]
        %v292 = vld [vmem:[%s221 + $0x7c] sm:$0xf]
        %v293 = vld [vmem:[%s221 + $0x80] sm:$0xf]
        %v294 = vld [vmem:[%s221 + $0x84] sm:$0xf]
        %v295 = vld [vmem:[%s221 + $0x88] sm:$0xf]
        %v296 = vld [vmem:[%s221 + $0x8c] sm:$0xf]
        %v297 = vld [vmem:[%s221 + $0x90] sm:$0xf]
        %v298 = vld [vmem:[%s221 + $0x94] sm:$0xf]
        %v299 = vld [vmem:[%s221 + $0x98] sm:$0xf]
        %v300 = vld [vmem:[%s221 + $0x9c] sm:$0xf]
        %v301 = vld [vmem:[%s221 + $0xa0] sm:$0xf]
        %v302 = vld [vmem:[%s221 + $0xa4] sm:$0xf]
        %v303 = vld [vmem:[%s221 + $0xa8] sm:$0xf]
        %v304 = vld [vmem:[%s221 + $0xac] sm:$0xf]
        %v305 = vld [vmem:[%s221 + $0xb0] sm:$0xf]
        %v306 = vld [vmem:[%s221 + $0xb4] sm:$0xf]
        %v307 = vld [vmem:[%s221 + $0xb8] sm:$0xf]
        %v308 = vld [vmem:[%s221 + $0xbc] sm:$0xf]
        %v309 = vld [vmem:[%s221 + $0xc0] sm:$0xf]
        %v310 = vld [vmem:[%s221 + $0xc4] sm:$0xf]
        %v311 = vld [vmem:[%s221 + $0xc8] sm:$0xf]
        %v312 = vld [vmem:[%s221 + $0xcc] sm:$0xf]
        %v313 = vld [vmem:[%s221 + $0xd0] sm:$0xf]
        %v314 = vld [vmem:[%s221 + $0xd4] sm:$0xf]
        %v315 = vld [vmem:[%s221 + $0xd8] sm:$0xf]
        %v316 = vld [vmem:[%s221 + $0xdc] sm:$0xf]
        %v317 = vld [vmem:[%s221 + $0xe0] sm:$0xf]
        %v318 = vld [vmem:[%s221 + $0xe4] sm:$0xf]
        %v319 = vld [vmem:[%s221 + $0xe8] sm:$0xf]
        %v320 = vld [vmem:[%s221 + $0xec] sm:$0xf]
        %v321 = vld [vmem:[%s221 + $0xf0] sm:$0xf]
        %v322 = vld [vmem:[%s221 + $0xf4] sm:$0xf]
        %v323 = vld [vmem:[%s221 + $0xf8] sm:$0xf]
        %v324 = vld [vmem:[%s221 + $0xfc] sm:$0xf]
        %v325 = vld [vmem:[%s221 + $0x100] sm:$0xf]
        %v326 = vld [vmem:[%s221 + $0x104] sm:$0xf]
        %v327 = vld [vmem:[%s221 + $0x108] sm:$0xf]
        %v328 = vld [vmem:[%s221 + $0x10c] sm:$0xf]
        %v329 = vld [vmem:[%s221 + $0x110] sm:$0xf]
        %v330 = vld [vmem:[%s221 + $0x114] sm:$0xf]
        %v331 = vld [vmem:[%s221 + $0x118] sm:$0xf]
        %v332 = vld [vmem:[%s221 + $0x11c] sm:$0xf]
        %v333 = vld [vmem:[%s221 + $0x120] sm:$0xf]
        %v334 = vld [vmem:[%s221 + $0x124] sm:$0xf]
        %v335 = vld [vmem:[%s221 + $0x128] sm:$0xf]
        %v336 = vld [vmem:[%s221 + $0x12c] sm:$0xf]
        %v337 = vld [vmem:[%s221 + $0x130] sm:$0xf]
        %v338 = vld [vmem:[%s221 + $0x134] sm:$0xf]
        %v339 = vld [vmem:[%s221 + $0x138] sm:$0xf]
        %v340 = vld [vmem:[%s221 + $0x13c] sm:$0xf]
        %v341 = vld [vmem:[%s221 + $0x140] sm:$0xf]
        %v342 = vld [vmem:[%s221 + $0x144] sm:$0xf]
        %v343 = vld [vmem:[%s221 + $0x148] sm:$0xf]
        %v344 = vld [vmem:[%s221 + $0x14c] sm:$0xf]
        %v345 = vld [vmem:[%s221 + $0x150] sm:$0xf]
        %v346 = vld [vmem:[%s221 + $0x154] sm:$0xf]
        %v347 = vld [vmem:[%s221 + $0x158] sm:$0xf]
        %v348 = vld [vmem:[%s221 + $0x15c] sm:$0xf]
        %v349 = vld [vmem:[%s221 + $0x160] sm:$0xf]
        %v350 = vld [vmem:[%s221 + $0x164] sm:$0xf]
        %v351 = vld [vmem:[%s221 + $0x168] sm:$0xf]
        %v352 = vld [vmem:[%s221 + $0x16c] sm:$0xf]
        %v353 = vld [vmem:[%s221 + $0x170] sm:$0xf]
        %v354 = vld [vmem:[%s221 + $0x174] sm:$0xf]
        %v355 = vld [vmem:[%s221 + $0x178] sm:$0xf]
        %v356 = vld [vmem:[%s221 + $0x17c] sm:$0xf]
        %v357 = vld [vmem:[%s221 + $0x180] sm:$0xf]
        %v358 = vld [vmem:[%s221 + $0x184] sm:$0xf]
        %v359 = vld [vmem:[%s221 + $0x188] sm:$0xf]
        %v360 = vld [vmem:[%s221 + $0x18c] sm:$0xf]
        %v361 = vld [vmem:[%s221 + $0x190] sm:$0xf]
        %v362 = vld [vmem:[%s221 + $0x194] sm:$0xf]
        %v363 = vld [vmem:[%s221 + $0x198] sm:$0xf]
        %v364 = vld [vmem:[%s221 + $0x19c] sm:$0xf]
        %v365 = vld [vmem:[%s221 + $0x1a0] sm:$0xf]
        %v366 = vld [vmem:[%s221 + $0x1a4] sm:$0xf]
        %v367 = vld [vmem:[%s221 + $0x1a8] sm:$0xf]
        %v368 = vld [vmem:[%s221 + $0x1ac] sm:$0xf]
        %v369 = vld [vmem:[%s221 + $0x1b0] sm:$0xf]
        %v370 = vld [vmem:[%s221 + $0x1b4] sm:$0xf]
        %v371 = vld [vmem:[%s221 + $0x1b8] sm:$0xf]
        %v372 = vld [vmem:[%s221 + $0x1bc] sm:$0xf]
        %v373 = vld [vmem:[%s221 + $0x1c0] sm:$0xf]
        %v374 = vld [vmem:[%s221 + $0x1c4] sm:$0xf]
        %v375 = vld [vmem:[%s221 + $0x1c8] sm:$0xf]
        %v376 = vld [vmem:[%s221 + $0x1cc] sm:$0xf]
        %v377 = vld [vmem:[%s221 + $0x1d0] sm:$0xf]
        %v378 = vld [vmem:[%s221 + $0x1d4] sm:$0xf]
        %v379 = vld [vmem:[%s221 + $0x1d8] sm:$0xf]
        %v380 = vld [vmem:[%s221 + $0x1dc] sm:$0xf]
        %v381 = vld [vmem:[%s221 + $0x1e0] sm:$0xf]
        %v382 = vld [vmem:[%s221 + $0x1e4] sm:$0xf]
        %v383 = vld [vmem:[%s221 + $0x1e8] sm:$0xf]
        %v384 = vld [vmem:[%s221 + $0x1ec] sm:$0xf]
        %v385 = vld [vmem:[%s221 + $0x1f0] sm:$0xf]
        %v386 = vld [vmem:[%s221 + $0x1f4] sm:$0xf]
        %v387 = vld [vmem:[%s221 + $0x1f8] sm:$0xf]
        %v388 = vld [vmem:[%s221 + $0x1fc] sm:$0xf]
        %v393 = vunpack.c.l.b16 %v257
        %v394 = vunpack.c.h.b16 %v257
        %v395 = vunpack.c.l.b16 %v258
        %v396 = vunpack.c.h.b16 %v258
        %v397 = vunpack.c.l.b16 %v259
        %v398 = vunpack.c.h.b16 %v259
        %v399 = vunpack.c.l.b16 %v260
        %v400 = vunpack.c.h.b16 %v260
        %v401 = vpack.c.b16 %v393, %v393
        %v402 = vpack.c.b16 %v394, %v394
        %v403 = vpack.c.b16 %v395, %v395
        %v404 = vpack.c.b16 %v396, %v396
        %v405 = vpack.c.b16 %v397, %v397
        %v406 = vpack.c.b16 %v398, %v398
        %v407 = vpack.c.b16 %v399, %v399
        %v408 = vpack.c.b16 %v400, %v400
        %v545 = vunpack.c.l.b16 %v261
        %v546 = vunpack.c.l.b16 %v262
        %v547 = vunpack.c.l.b16 %v263
        %v548 = vunpack.c.l.b16 %v264
        %v549 = vunpack.c.l.b16 %v265
        %v550 = vunpack.c.l.b16 %v266
        %v551 = vunpack.c.l.b16 %v267
        %v552 = vunpack.c.l.b16 %v268
        %v553 = vunpack.c.l.b16 %v269
        %v554 = vunpack.c.l.b16 %v270
        %v555 = vunpack.c.l.b16 %v271
        %v556 = vunpack.c.l.b16 %v272
        %v557 = vunpack.c.l.b16 %v273
        %v558 = vunpack.c.l.b16 %v274
        %v559 = vunpack.c.l.b16 %v275
        %v560 = vunpack.c.l.b16 %v276
        %v561 = vunpack.c.l.b16 %v277
        %v562 = vunpack.c.l.b16 %v278
        %v563 = vunpack.c.l.b16 %v279
        %v564 = vunpack.c.l.b16 %v280
        %v565 = vunpack.c.l.b16 %v281
        %v566 = vunpack.c.l.b16 %v282
        %v567 = vunpack.c.l.b16 %v283
        %v568 = vunpack.c.l.b16 %v284
        %v569 = vunpack.c.l.b16 %v285
        %v570 = vunpack.c.l.b16 %v286
        %v571 = vunpack.c.l.b16 %v287
        %v572 = vunpack.c.l.b16 %v288
        %v573 = vunpack.c.l.b16 %v289
        %v574 = vunpack.c.l.b16 %v290
        %v575 = vunpack.c.l.b16 %v291
        %v576 = vunpack.c.l.b16 %v292
        %v577 = vunpack.c.l.b16 %v293
        %v578 = vunpack.c.l.b16 %v294
        %v579 = vunpack.c.l.b16 %v295
        %v580 = vunpack.c.l.b16 %v296
        %v581 = vunpack.c.l.b16 %v297
        %v582 = vunpack.c.l.b16 %v298
        %v583 = vunpack.c.l.b16 %v299
        %v584 = vunpack.c.l.b16 %v300
        %v585 = vunpack.c.l.b16 %v301
        %v586 = vunpack.c.l.b16 %v302
        %v587 = vunpack.c.l.b16 %v303
        %v588 = vunpack.c.l.b16 %v304
        %v589 = vunpack.c.l.b16 %v305
        %v590 = vunpack.c.l.b16 %v306
        %v591 = vunpack.c.l.b16 %v307
        %v592 = vunpack.c.l.b16 %v308
        %v593 = vunpack.c.l.b16 %v309
        %v594 = vunpack.c.l.b16 %v310
        %v595 = vunpack.c.l.b16 %v311
        %v596 = vunpack.c.l.b16 %v312
        %v597 = vunpack.c.l.b16 %v313
        %v598 = vunpack.c.l.b16 %v314
        %v599 = vunpack.c.l.b16 %v315
        %v600 = vunpack.c.l.b16 %v316
        %v601 = vunpack.c.l.b16 %v317
        %v602 = vunpack.c.l.b16 %v318
        %v603 = vunpack.c.l.b16 %v319
        %v604 = vunpack.c.l.b16 %v320
        %v605 = vunpack.c.l.b16 %v321
        %v606 = vunpack.c.l.b16 %v322
        %v607 = vunpack.c.l.b16 %v323
        %v608 = vunpack.c.l.b16 %v324
        %v609 = vunpack.c.l.b16 %v325
        %v610 = vunpack.c.l.b16 %v326
        %v611 = vunpack.c.l.b16 %v327
        %v612 = vunpack.c.l.b16 %v328
        %v613 = vunpack.c.l.b16 %v329
        %v614 = vunpack.c.l.b16 %v330
        %v615 = vunpack.c.l.b16 %v331
        %v616 = vunpack.c.l.b16 %v332
        %v617 = vunpack.c.l.b16 %v333
        %v618 = vunpack.c.l.b16 %v334
        %v619 = vunpack.c.l.b16 %v335
        %v620 = vunpack.c.l.b16 %v336
        %v621 = vunpack.c.l.b16 %v337
        %v622 = vunpack.c.l.b16 %v338
        %v623 = vunpack.c.l.b16 %v339
        %v624 = vunpack.c.l.b16 %v340
        %v625 = vunpack.c.l.b16 %v341
        %v626 = vunpack.c.l.b16 %v342
        %v627 = vunpack.c.l.b16 %v343
        %v628 = vunpack.c.l.b16 %v344
        %v629 = vunpack.c.l.b16 %v345
        %v630 = vunpack.c.l.b16 %v346
        %v631 = vunpack.c.l.b16 %v347
        %v632 = vunpack.c.l.b16 %v348
        %v633 = vunpack.c.l.b16 %v349
        %v634 = vunpack.c.l.b16 %v350
        %v635 = vunpack.c.l.b16 %v351
        %v636 = vunpack.c.l.b16 %v352
        %v637 = vunpack.c.l.b16 %v353
        %v638 = vunpack.c.l.b16 %v354
        %v639 = vunpack.c.l.b16 %v355
        %v640 = vunpack.c.l.b16 %v356
        %v641 = vunpack.c.l.b16 %v357
        %v642 = vunpack.c.l.b16 %v358
        %v643 = vunpack.c.l.b16 %v359
        %v644 = vunpack.c.l.b16 %v360
        %v645 = vunpack.c.l.b16 %v361
        %v646 = vunpack.c.l.b16 %v362
        %v647 = vunpack.c.l.b16 %v363
        %v648 = vunpack.c.l.b16 %v364
        %v649 = vunpack.c.l.b16 %v365
        %v650 = vunpack.c.l.b16 %v366
        %v651 = vunpack.c.l.b16 %v367
        %v652 = vunpack.c.l.b16 %v368
        %v653 = vunpack.c.l.b16 %v369
        %v654 = vunpack.c.l.b16 %v370
        %v655 = vunpack.c.l.b16 %v371
        %v656 = vunpack.c.l.b16 %v372
        %v657 = vunpack.c.l.b16 %v373
        %v658 = vunpack.c.l.b16 %v374
        %v659 = vunpack.c.l.b16 %v375
        %v660 = vunpack.c.l.b16 %v376
        %v661 = vunpack.c.l.b16 %v377
        %v662 = vunpack.c.l.b16 %v378
        %v663 = vunpack.c.l.b16 %v379
        %v664 = vunpack.c.l.b16 %v380
        %v665 = vunpack.c.l.b16 %v381
        %v666 = vunpack.c.l.b16 %v382
        %v667 = vunpack.c.l.b16 %v383
        %v668 = vunpack.c.l.b16 %v384
        %v669 = vunpack.c.l.b16 %v385
        %v670 = vunpack.c.l.b16 %v386
        %v671 = vunpack.c.l.b16 %v387
        %v672 = vunpack.c.l.b16 %v388
        %v673 = vpack.c.b16 %v546, %v545
        %v674 = vpack.c.b16 %v548, %v547
        %v675 = vpack.c.b16 %v550, %v549
        %v676 = vpack.c.b16 %v552, %v551
        %v677 = vpack.c.b16 %v554, %v553
        %v678 = vpack.c.b16 %v556, %v555
        %v679 = vpack.c.b16 %v558, %v557
        %v680 = vpack.c.b16 %v560, %v559
        %v681 = vpack.c.b16 %v562, %v561
        %v682 = vpack.c.b16 %v564, %v563
        %v683 = vpack.c.b16 %v566, %v565
        %v684 = vpack.c.b16 %v568, %v567
        %v685 = vpack.c.b16 %v570, %v569
        %v686 = vpack.c.b16 %v572, %v571
        %v687 = vpack.c.b16 %v574, %v573
        %v688 = vpack.c.b16 %v576, %v575
        %v689 = vpack.c.b16 %v578, %v577
        %v690 = vpack.c.b16 %v580, %v579
        %v691 = vpack.c.b16 %v582, %v581
        %v692 = vpack.c.b16 %v584, %v583
        %v693 = vpack.c.b16 %v586, %v585
        %v694 = vpack.c.b16 %v588, %v587
        %v695 = vpack.c.b16 %v590, %v589
        %v696 = vpack.c.b16 %v592, %v591
        %v697 = vpack.c.b16 %v594, %v593
        %v698 = vpack.c.b16 %v596, %v595
        %v699 = vpack.c.b16 %v598, %v597
        %v700 = vpack.c.b16 %v600, %v599
        %v701 = vpack.c.b16 %v602, %v601
        %v702 = vpack.c.b16 %v604, %v603
        %v703 = vpack.c.b16 %v606, %v605
        %v704 = vpack.c.b16 %v608, %v607
        %v705 = vpack.c.b16 %v610, %v609
        %v706 = vpack.c.b16 %v612, %v611
        %v707 = vpack.c.b16 %v614, %v613
        %v708 = vpack.c.b16 %v616, %v615
        %v709 = vpack.c.b16 %v618, %v617
        %v710 = vpack.c.b16 %v620, %v619
        %v711 = vpack.c.b16 %v622, %v621
        %v712 = vpack.c.b16 %v624, %v623
        %v713 = vpack.c.b16 %v626, %v625
        %v714 = vpack.c.b16 %v628, %v627
        %v715 = vpack.c.b16 %v630, %v629
        %v716 = vpack.c.b16 %v632, %v631
        %v717 = vpack.c.b16 %v634, %v633
        %v718 = vpack.c.b16 %v636, %v635
        %v719 = vpack.c.b16 %v638, %v637
        %v720 = vpack.c.b16 %v640, %v639
        %v721 = vpack.c.b16 %v642, %v641
        %v722 = vpack.c.b16 %v644, %v643
        %v723 = vpack.c.b16 %v646, %v645
        %v724 = vpack.c.b16 %v648, %v647
        %v725 = vpack.c.b16 %v650, %v649
        %v726 = vpack.c.b16 %v652, %v651
        %v727 = vpack.c.b16 %v654, %v653
        %v728 = vpack.c.b16 %v656, %v655
        %v729 = vpack.c.b16 %v658, %v657
        %v730 = vpack.c.b16 %v660, %v659
        %v731 = vpack.c.b16 %v662, %v661
        %v732 = vpack.c.b16 %v664, %v663
        %v733 = vpack.c.b16 %v666, %v665
        %v734 = vpack.c.b16 %v668, %v667
        %v735 = vpack.c.b16 %v670, %v669
        %v736 = vpack.c.b16 %v672, %v671
        %801 = vmatprep.subr.bf16.mxu0 0
        %802 = vmatpush1.bf16.msra.mxu0 %v673
        %803 = vmatprep.subr.bf16.mxu0 0
        %804 = vmatpush1.bf16.msra.mxu0 %v674
        %805 = vmatprep.subr.bf16.mxu0 0
        %806 = vmatpush1.bf16.msra.mxu0 %v675
        %807 = vmatprep.subr.bf16.mxu0 0
        %808 = vmatpush1.bf16.msra.mxu0 %v676
        %809 = vmatprep.subr.bf16.mxu0 0
        %810 = vmatpush1.bf16.msra.mxu0 %v677
        %811 = vmatprep.subr.bf16.mxu0 0
        %812 = vmatpush1.bf16.msra.mxu0 %v678
        %813 = vmatprep.subr.bf16.mxu0 0
        %814 = vmatpush1.bf16.msra.mxu0 %v679
        %815 = vmatprep.subr.bf16.mxu0 0
        %816 = vmatpush1.bf16.msra.mxu0 %v680
        %817 = vmatprep.subr.bf16.mxu0 0
        %818 = vmatpush1.bf16.msra.mxu0 %v681
        %819 = vmatprep.subr.bf16.mxu0 0
        %820 = vmatpush1.bf16.msra.mxu0 %v682
        %821 = vmatprep.subr.bf16.mxu0 0
        %822 = vmatpush1.bf16.msra.mxu0 %v683
        %823 = vmatprep.subr.bf16.mxu0 0
        %824 = vmatpush1.bf16.msra.mxu0 %v684
        %825 = vmatprep.subr.bf16.mxu0 0
        %826 = vmatpush1.bf16.msra.mxu0 %v685
        %827 = vmatprep.subr.bf16.mxu0 0
        %828 = vmatpush1.bf16.msra.mxu0 %v686
        %829 = vmatprep.subr.bf16.mxu0 0
        %830 = vmatpush1.bf16.msra.mxu0 %v687
        %831 = vmatprep.subr.bf16.mxu0 0
        %832 = vmatpush1.bf16.msra.mxu0 %v688
        %833 = vmatprep.mubr.bf16.mxu0 %v402
        %834 = vmatmul.mubr.bf16.gmra.mrb[0].mxu0 %v401
        %v835 = vpop.f32.mrb[0].mxu0
        %v836 = vadd.f32 0.0, %v835
        %v837 = vpop.f32.mrb[0].mxu0
        %v838 = vpop.f32.mrb[0].mxu0
        %v839 = vpop.f32.mrb[0].mxu0
        %840 = vdwg.mxu0
        %841 = vmatprep.subr.bf16.mxu0 0
        %842 = vmatpush1.bf16.msra.mxu0 %v689
        %843 = vmatprep.subr.bf16.mxu0 0
        %844 = vmatpush1.bf16.msra.mxu0 %v690
        %845 = vmatprep.subr.bf16.mxu0 0
        %846 = vmatpush1.bf16.msra.mxu0 %v691
        %847 = vmatprep.subr.bf16.mxu0 0
        %848 = vmatpush1.bf16.msra.mxu0 %v692
        %849 = vmatprep.subr.bf16.mxu0 0
        %850 = vmatpush1.bf16.msra.mxu0 %v693
        %851 = vmatprep.subr.bf16.mxu0 0
        %852 = vmatpush1.bf16.msra.mxu0 %v694
        %853 = vmatprep.subr.bf16.mxu0 0
        %854 = vmatpush1.bf16.msra.mxu0 %v695
        %855 = vmatprep.subr.bf16.mxu0 0
        %856 = vmatpush1.bf16.msra.mxu0 %v696
        %857 = vmatprep.subr.bf16.mxu0 0
        %858 = vmatpush1.bf16.msra.mxu0 %v697
        %859 = vmatprep.subr.bf16.mxu0 0
        %860 = vmatpush1.bf16.msra.mxu0 %v698
        %861 = vmatprep.subr.bf16.mxu0 0
        %862 = vmatpush1.bf16.msra.mxu0 %v699
        %863 = vmatprep.subr.bf16.mxu0 0
        %864 = vmatpush1.bf16.msra.mxu0 %v700
        %865 = vmatprep.subr.bf16.mxu0 0
        %866 = vmatpush1.bf16.msra.mxu0 %v701
        %867 = vmatprep.subr.bf16.mxu0 0
        %868 = vmatpush1.bf16.msra.mxu0 %v702
        %869 = vmatprep.subr.bf16.mxu0 0
        %870 = vmatpush1.bf16.msra.mxu0 %v703
        %871 = vmatprep.subr.bf16.mxu0 0
        %872 = vmatpush1.bf16.msra.mxu0 %v704
        %873 = vmatprep.mubr.bf16.mxu0 %v404
        %874 = vmatmul.mubr.bf16.gmra.mrb[0].mxu0 %v403
        %v875 = vpop.f32.mrb[0].mxu0
        %v876 = vadd.f32 %v836, %v875
        %v877 = vpop.f32.mrb[0].mxu0
        %v878 = vpop.f32.mrb[0].mxu0
        %v879 = vpop.f32.mrb[0].mxu0
        %880 = vdwg.mxu0
        %881 = vmatprep.subr.bf16.mxu0 0
        %882 = vmatpush1.bf16.msra.mxu0 %v705
        %883 = vmatprep.subr.bf16.mxu0 0
        %884 = vmatpush1.bf16.msra.mxu0 %v706
        %885 = vmatprep.subr.bf16.mxu0 0
        %886 = vmatpush1.bf16.msra.mxu0 %v707
        %887 = vmatprep.subr.bf16.mxu0 0
        %888 = vmatpush1.bf16.msra.mxu0 %v708
        %889 = vmatprep.subr.bf16.mxu0 0
        %890 = vmatpush1.bf16.msra.mxu0 %v709
        %891 = vmatprep.subr.bf16.mxu0 0
        %892 = vmatpush1.bf16.msra.mxu0 %v710
        %893 = vmatprep.subr.bf16.mxu0 0
        %894 = vmatpush1.bf16.msra.mxu0 %v711
        %895 = vmatprep.subr.bf16.mxu0 0
        %896 = vmatpush1.bf16.msra.mxu0 %v712
        %897 = vmatprep.subr.bf16.mxu0 0
        %898 = vmatpush1.bf16.msra.mxu0 %v713
        %899 = vmatprep.subr.bf16.mxu0 0
        %900 = vmatpush1.bf16.msra.mxu0 %v714
        %901 = vmatprep.subr.bf16.mxu0 0
        %902 = vmatpush1.bf16.msra.mxu0 %v715
        %903 = vmatprep.subr.bf16.mxu0 0
        %904 = vmatpush1.bf16.msra.mxu0 %v716
        %905 = vmatprep.subr.bf16.mxu0 0
        %906 = vmatpush1.bf16.msra.mxu0 %v717
        %907 = vmatprep.subr.bf16.mxu0 0
        %908 = vmatpush1.bf16.msra.mxu0 %v718
        %909 = vmatprep.subr.bf16.mxu0 0
        %910 = vmatpush1.bf16.msra.mxu0 %v719
        %911 = vmatprep.subr.bf16.mxu0 0
        %912 = vmatpush1.bf16.msra.mxu0 %v720
        %913 = vmatprep.mubr.bf16.mxu0 %v406
        %914 = vmatmul.mubr.bf16.gmra.mrb[0].mxu0 %v405
        %v915 = vpop.f32.mrb[0].mxu0
        %v916 = vadd.f32 %v876, %v915
        %v917 = vpop.f32.mrb[0].mxu0
        %v918 = vpop.f32.mrb[0].mxu0
        %v919 = vpop.f32.mrb[0].mxu0
        %920 = vdwg.mxu0
        %921 = vmatprep.subr.bf16.mxu0 0
        %922 = vmatpush1.bf16.msra.mxu0 %v721
        %923 = vmatprep.subr.bf16.mxu0 0
        %924 = vmatpush1.bf16.msra.mxu0 %v722
        %925 = vmatprep.subr.bf16.mxu0 0
        %926 = vmatpush1.bf16.msra.mxu0 %v723
        %927 = vmatprep.subr.bf16.mxu0 0
        %928 = vmatpush1.bf16.msra.mxu0 %v724
        %929 = vmatprep.subr.bf16.mxu0 0
        %930 = vmatpush1.bf16.msra.mxu0 %v725
        %931 = vmatprep.subr.bf16.mxu0 0
        %932 = vmatpush1.bf16.msra.mxu0 %v726
        %933 = vmatprep.subr.bf16.mxu0 0
        %934 = vmatpush1.bf16.msra.mxu0 %v727
        %935 = vmatprep.subr.bf16.mxu0 0
        %936 = vmatpush1.bf16.msra.mxu0 %v728
        %937 = vmatprep.subr.bf16.mxu0 0
        %938 = vmatpush1.bf16.msra.mxu0 %v729
        %939 = vmatprep.subr.bf16.mxu0 0
        %940 = vmatpush1.bf16.msra.mxu0 %v730
        %941 = vmatprep.subr.bf16.mxu0 0
        %942 = vmatpush1.bf16.msra.mxu0 %v731
        %943 = vmatprep.subr.bf16.mxu0 0
        %944 = vmatpush1.bf16.msra.mxu0 %v732
        %945 = vmatprep.subr.bf16.mxu0 0
        %946 = vmatpush1.bf16.msra.mxu0 %v733
        %947 = vmatprep.subr.bf16.mxu0 0
        %948 = vmatpush1.bf16.msra.mxu0 %v734
        %949 = vmatprep.subr.bf16.mxu0 0
        %950 = vmatpush1.bf16.msra.mxu0 %v735
        %951 = vmatprep.subr.bf16.mxu0 0
        %952 = vmatpush1.bf16.msra.mxu0 %v736
        %953 = vmatprep.mubr.bf16.mxu0 %v408
        %954 = vmatmul.mubr.bf16.gmra.mrb[0].mxu0 %v407
        %v955 = vpop.f32.mrb[0].mxu0
        %v956 = vadd.f32 %v916, %v955
        %v957 = vpop.f32.mrb[0].mxu0
        %v958 = vpop.f32.mrb[0].mxu0
        %v959 = vpop.f32.mrb[0].mxu0
        %960 = vdwg.mxu0
        %v961 = vadd.f32 %v256, %v956
        %962 = vst [vmem:[#allocation2] sm:$0xff] %v961
        %p963 = scmp.eq.s32.totalorder %s26, 6
        // Predicated region
        $region49: #{tpu_custom_call.1} parent=31 // pred_check
          %p964 = pneg %p963
        $region50: #{tpu_custom_call.1} parent=31 // pred_check_branch
          %966 = sbr.rel (%p964) target = $region52
        $region51: #{tpu_custom_call.1} parent=31 // pred_region
          %v967 = vld [vmem:[#allocation2] sm:$0xff]
          %v968 = vld [vmem:[#allocation8] sm:$0x1]
          %v970 = vlaneseq
          %v971 = vshrl.u32 %v970, 7
          %v972 = vsub.s32 0, %v971
          %v973 = vrot.slane %v968, %v972
          %v975 = vadd.f32 %v967, %v973
          %976 = vst [vmem:[#allocation9] sm:$0xff] %v975
        $region52: #{tpu_custom_call.1} parent=31 // pred_fallthru
          _
        // Predicated region
        $region53: #{tpu_custom_call.1} parent=31 // pred_check
          %p977 = pneg %p126
        $region54: #{tpu_custom_call.1} parent=31 // pred_check_branch
          %979 = sbr.rel (%p977) target = $region56
        $region55: #{tpu_custom_call.1} parent=31 // pred_region
          %s981 = ssub.s32 128, 128
          %982 = vsyncadd [#allocation5], %s981
          %s983 = smul.addr %s25, 128
          %s984 = scalar_lea.hbm %s3, %s983
          %s986 = sshll.u32 [#allocation9], 4
          %s987 = int_to_ptr.vmem [resolvable:$true] %s986
          %989 = dma.vmem_to_hbm [thread:$0]  %s987, 128, %s984, [#allocation5]
        $region56: #{tpu_custom_call.1} parent=31 // pred_fallthru
          _
        // Predicated region
        $region57: #{tpu_custom_call.1} parent=31 // pred_check
          %p990 = pneg %p126
        $region58: #{tpu_custom_call.1} parent=31 // pred_check_branch
          %992 = sbr.rel (%p990) target = $region60
        $region59: #{tpu_custom_call.1} parent=31 // pred_region
          %993 = dma.done [#allocation5], 128
        $region60: #{tpu_custom_call.1} parent=31 // pred_fallthru
          _
      $region32: #{tpu_custom_call.1} parent=5 // pred_fallthru
        _
      %p994 = scmp.le.s32.totalorder 2, %s16
      // Predicated region
      $region61: #{tpu_custom_call.1} parent=5 // pred_check
        %p995 = pneg %p994
      $region62: #{tpu_custom_call.1} parent=5 // pred_check_branch
        %997 = sbr.rel (%p995) target = $region64
      $region63: #{tpu_custom_call.1} parent=5 // pred_region
        %s998 = ssub.s32 %s16, 2
      $region64: #{tpu_custom_call.1} parent=5 // pred_fallthru
        _
    $region6: #{tpu_custom_call.1} parent=1 // loop_footer
      %s20 = sadd.s32 1, %s16
    $region7: #{tpu_custom_call.1} parent=1 // loop_footer_branch
      %15 = sbr.rel target = $region3
    $region8: #{tpu_custom_call.1} parent=1 // loop_exit
      _
    %999 = vsyncpa [#allocation4], 1
    %s1000 = scalar_lea.sflag [#allocation4], 1
    %1001 = vsyncpa %s1000, 1
    %1002 = vsyncpa [#allocation7], 1
    %s1003 = scalar_lea.sflag [#allocation7], 1
    %1004 = vsyncpa %s1003, 1
    %1005 = vsyncpa [#allocation5], 1
    %s1006 = scalar_lea.sflag [#allocation5], 1
    %1007 = vsyncpa %s1006, 1

</llo_original>
